<compile_context>
chip_gen: v5e
topology: v5e:2x2
jax: 0.10.0
libtpu: 0.0.40
codegen_flags: <defaults>
</compile_context>

<pallas_src>
import jax
import jax.numpy as jnp
from jax.experimental import pallas as pl
from jax.experimental.pallas import tpu as pltpu

GEM_EPS = 1e-6   # GeneralizedMeanPooling eps
GEM_P = 3.0      # GeneralizedMeanPooling norm
L2_EPS = 1e-12   # guard for l2norm (avoids inf/NaN on a zero row)

_VMEM = pl.BlockSpec(memory_space=pltpu.MemorySpace.VMEM)
_SMEM = pl.BlockSpec(memory_space=pltpu.MemorySpace.SMEM)


# ---------------------------------------------------------------------------
# Kernel 1: GeM-1 (global GeM) reduction.
#   x block: (bblk, cblk, H*W)  ->  o block: (bblk, cblk)
#   o = mean_{HW}( clamp(x, eps) ** 3 ) ** (1/3)
# Spatial axis on lanes (large / near-dense), channels on the output lane axis
# (lane-dense stores at real channel counts). Cast to f32 happens inside, so
# bf16 feature maps stream at half the HBM bytes.
# ---------------------------------------------------------------------------
def _gem1_kernel(x_ref, o_ref):
    x = jnp.maximum(x_ref[...].astype(jnp.float32), GEM_EPS)
    m = jnp.mean(x * x * x, axis=-1)                  # > 0 since x >= eps
    o_ref[...] = jnp.exp(jnp.log(m) * (1.0 / GEM_P))  # m ** (1/3) via EUP


def _gem_tiles(B, C, HW, itemsize, budget_bytes=4 * 1024 * 1024):
    """Pick (batch, channel) block sizes: keep input blocks ~<= budget so the
    double-buffered pipeline fits comfortably under a 32 MiB VMEM limit on all
    generations (incl. v7x's 64 MiB physical VMEM)."""
    # Batch tile: full batch when small, else 8-sublane slices.
    bblk = 8 if (B > 8 and B % 8 == 0) else B
    # Channel tile: full C unless a smaller multiple-of-128 divisor keeps the
    # block within budget (keeps the output lane axis unmasked).
    cblk = C
    if C % 128 == 0:
        while (cblk > 128 and bblk * cblk * HW * itemsize > budget_bytes
               and (cblk // 2) % 128 == 0 and C % (cblk // 2) == 0):
            cblk //= 2
    return bblk, cblk


def gem_pool_global(x):
    """GeneralizedMeanPooling(norm=3, output_size=1) on NCHW x -> (B, C) f32."""
    B, C, H, W = x.shape
    HW = H * W
    xr = x.reshape(B, C, HW)                      # trailing-dim merge: no copy
    bblk, cblk = _gem_tiles(B, C, HW, x.dtype.itemsize)
    grid = (B // bblk, C // cblk)
    return pl.pallas_call(
        _gem1_kernel,
        out_shape=jax.ShapeDtypeStruct((B, C), jnp.float32),
        grid=grid,
        in_specs=[pl.BlockSpec((bblk, cblk, HW), lambda b, c: (b, c, 0))],
        out_specs=pl.BlockSpec((bblk, cblk), lambda b, c: (b, c)),
        compiler_params=pltpu.CompilerParams(
            dimension_semantics=("parallel", "parallel"),
            vmem_limit_bytes=32 * 1024 * 1024,
        ),
    )(xr)


# ---------------------------------------------------------------------------
# Kernel 2: FC head (single shot; weights stay resident, no K grid).
#   out   = l2norm(xcat @ Wt  + b)
#   out_g = l2norm(xg   @ W1t + b1)
#   o     = out + alpha * out_g          (alpha = epoch / 80, host-divided)
# ---------------------------------------------------------------------------
def _head_kernel(alpha_ref, xcat_ref, w_ref, b_ref, xg_ref, w1_ref, b1_ref, o_ref):
    alpha = alpha_ref[0]

    w = w_ref[...]
    x = xcat_ref[...].astype(w.dtype)             # bf16 weights -> bf16 MXU path
    out = jnp.dot(x, w, preferred_element_type=jnp.float32) \
        + b_ref[...].astype(jnp.float32)
    out = out * jax.lax.rsqrt(
        jnp.maximum(jnp.sum(out * out, axis=-1, keepdims=True), L2_EPS))

    w1 = w1_ref[...]
    xg = xg_ref[...].astype(w1.dtype)
    out_g = jnp.dot(xg, w1, preferred_element_type=jnp.float32) \
        + b1_ref[...].astype(jnp.float32)
    out_g = out_g * jax.lax.rsqrt(
        jnp.maximum(jnp.sum(out_g * out_g, axis=-1, keepdims=True), L2_EPS))

    o_ref[...] = out + alpha * out_g


def encode_head(xcat, xg, params, epoch):
    """fc / fc1 + l2norm + epoch mixing (one Pallas kernel)."""
    B = xcat.shape[0]
    E = params["fc_b"].shape[-1]
    Bp = ((B + 7) // 8) * 8                       # pad batch to sublane multiple
    if Bp != B:
        xcat = jnp.pad(xcat, ((0, Bp - B), (0, 0)))
        xg = jnp.pad(xg, ((0, Bp - B), (0, 0)))
    alpha = jnp.asarray([float(epoch) / 80.0], dtype=jnp.float32)

    out = pl.pallas_call(
        _head_kernel,
        out_shape=jax.ShapeDtypeStruct((Bp, E), jnp.float32),
        in_specs=[_SMEM, _VMEM, _VMEM, _VMEM, _VMEM, _VMEM, _VMEM],
        out_specs=_VMEM,
    )(
        alpha,
        xcat, params["fc_wt"], params["fc_b"],
        xg, params["fc1_wt"], params["fc1_b"],
    )
    return out[:B] if Bp != B else out


def prepare_params(fc_w, fc_b, fc1_w, fc1_b, weight_dtype=jnp.float32):
    """One-time parameter prep: PyTorch Linear weights (out,in) -> (in,out).

    Use weight_dtype=jnp.bfloat16 on v6e/v7x for the weight-DMA-bound head
    (accumulation / bias / l2norm stay f32 inside the kernel)."""
    return {
        "fc_wt": jnp.asarray(fc_w).T.astype(weight_dtype),
        "fc_b": jnp.asarray(fc_b).reshape(1, -1).astype(jnp.float32),
        "fc1_wt": jnp.asarray(fc1_w).T.astype(weight_dtype),
        "fc1_b": jnp.asarray(fc1_b).reshape(1, -1).astype(jnp.float32),
    }


def encoder_image_forward(out1, out2, out3, out_7x7, params, epoch):
    """EncoderImage.forward from the backbone feature maps onward."""
    # GeM-7 -> concat -> GeM-1 collapses to direct GeM-1 per stage (uniform
    # windows require H, W divisible by 7 for out1..out3, as in ResNet@224).
    for t in (out1, out2, out3):
        assert t.shape[2] % 7 == 0 and t.shape[3] % 7 == 0, (
            "GeM-7/GeM-1 collapse requires spatial dims divisible by 7")

    p1 = gem_pool_global(out1)        # == GeM-1(GeM-7(out1)) columns of xcat
    p2 = gem_pool_global(out2)
    p3 = gem_pool_global(out3)
    p4 = gem_pool_global(out_7x7)     # shared: xcat tail AND the fc1 (out_g) input

    xcat = jnp.concatenate([p1, p2, p3, p4], axis=1)   # tiny (B, 3840) copy
    return encode_head(xcat, p4, params, epoch)


if __name__ == "__main__":
    key = jax.random.PRNGKey(0)
    ks = jax.random.split(key, 8)

    # Small stand-ins for the ResNet stage outputs (real: 256/512/1024/2048 ch).
    B = 2
    C1, C2, C3, C4 = 8, 16, 32, 64
    EMBED = 32
    out1 = jax.random.normal(ks[0], (B, C1, 28, 28), jnp.float32)
    out2 = jax.random.normal(ks[1], (B, C2, 14, 14), jnp.float32)
    out3 = jax.random.normal(ks[2], (B, C3, 14, 14), jnp.float32)
    out_7x7 = jax.random.normal(ks[3], (B, C4, 7, 7), jnp.float32)

    DCAT = C1 + C2 + C3 + C4   # analogue of 3840 in the full-size model

    # Deterministic parameter init (PyTorch Linear convention: W is (out, in)).
    def lin_init(kw, kb, d_out, d_in):
        bound = 1.0 / jnp.sqrt(d_in)
        w = jax.random.uniform(kw, (d_out, d_in), jnp.float32, -bound, bound)
        b = jax.random.uniform(kb, (d_out,), jnp.float32, -bound, bound)
        return w, b

    fc_w, fc_b = lin_init(ks[4], ks[5], EMBED, DCAT)    # self.fc  (3840 -> embed)
    fc1_w, fc1_b = lin_init(ks[6], ks[7], EMBED, C4)    # self.fc1 (2048 -> embed)
    params = prepare_params(fc_w, fc_b, fc1_w, fc1_b)   # transpose ONCE here

    epoch = 8.0
    out = encoder_image_forward(out1, out2, out3, out_7x7, params, epoch)
    out = jax.block_until_ready(out)
    assert out.shape == (B, EMBED) and out.dtype == jnp.float32
    assert bool(jnp.all(jnp.isfinite(out)))
    print("KERNEL_OK")
</pallas_src>

<mosaic_0001>
module attributes {stable_mosaic.version = 11 : i64} {
  func.func @_gem1_kernel(%arg0: i32, %arg1: i32, %arg2: memref<2x8x784xf32, #tpu.memory_space<vmem>>, %arg3: memref<2x8xf32, #tpu.memory_space<vmem>>) attributes {dimension_semantics = [#tpu.dimension_semantics<parallel>, #tpu.dimension_semantics<parallel>], iteration_bounds = array<i64: 1, 1>, scalar_prefetch = 0 : i64, scratch_operands = 0 : i64, tpu.core_type = #tpu.core_type<tc>, window_params = [{transform_indices = @transform_0, window_bounds = array<i64: 2, 8, 784>}, {transform_indices = @transform_1, window_bounds = array<i64: 2, 8>}]} {
    %c0 = arith.constant 0 : index
    %c0_0 = arith.constant 0 : index
    %c0_1 = arith.constant 0 : index
    %0 = vector.load %arg2[%c0, %c0_0, %c0_1] : memref<2x8x784xf32, #tpu.memory_space<vmem>>, vector<2x8x784xf32>
    %cst = arith.constant 9.99999997E-7 : f32
    %1 = vector.broadcast %cst : f32 to vector<2x8x784xf32>
    %2 = arith.maximumf %0, %1 : vector<2x8x784xf32>
    %3 = arith.mulf %2, %2 : vector<2x8x784xf32>
    %4 = arith.mulf %3, %2 : vector<2x8x784xf32>
    %cst_2 = arith.constant dense<0.000000e+00> : vector<2x8xf32>
    %5 = vector.multi_reduction <add>, %4, %cst_2 [2] : vector<2x8x784xf32> to vector<2x8xf32>
    %cst_3 = arith.constant 7.840000e+02 : f32
    %6 = vector.broadcast %cst_3 : f32 to vector<2x8xf32>
    %7 = arith.divf %5, %6 : vector<2x8xf32>
    %8 = math.log %7 : vector<2x8xf32>
    %cst_4 = arith.constant 0.333333343 : f32
    %9 = vector.broadcast %cst_4 : f32 to vector<2x8xf32>
    %10 = arith.mulf %8, %9 : vector<2x8xf32>
    %11 = math.exp %10 : vector<2x8xf32>
    %c0_5 = arith.constant 0 : index
    %c0_6 = arith.constant 0 : index
    %12 = vector.load %arg3[%c0_5, %c0_6] : memref<2x8xf32, #tpu.memory_space<vmem>>, vector<2x8xf32>
    tpu.vector_store %arg3[%c0_5, %c0_6], %11 {strides = array<i32>} : memref<2x8xf32, #tpu.memory_space<vmem>>, vector<2x8xf32>,
    return
  }
  func.func @transform_0(%arg0: i32, %arg1: i32) -> (i32, i32, i32) {
    %c0_i32 = arith.constant 0 : i32
    %c0_i32_0 = arith.constant 0 : i32
    return %arg0, %arg1, %c0_i32 : i32, i32, i32
  }
  func.func @transform_1(%arg0: i32, %arg1: i32) -> (i32, i32) {
    %c0_i32 = arith.constant 0 : i32
    return %arg0, %arg1 : i32, i32
  }
}

</mosaic_0001>

<llo_original>
// kernel: tpu_custom_call.1
$region0: #{tpu_custom_call.1}
  #allocation0 [shape = 'u32[]', space=smem, size = 0x4, offset = 0x4, fixed_abs, tag = 'smem constant byte address 0x4 - core index']
  #allocation1 [shape = 'u32[72,128]{1,0:T(1,128)}', space=vmem, size = 0x9000, scoped, tag = 'internal scratch']
  %s0 = inlined_call_operand.hbm [shape: f32[2,8,784], index: 0, kind: input, shape index: {}]
  %s1 = inlined_call_operand.hbm [shape: f32[2,8], index: 1, kind: output, shape index: {}]
  %s2 = sld [smem:[#allocation0]]
  $region18: #{tpu_custom_call.1} parent=0
    _
  %s4 = ssub.s32 1, %s2
  %s5 = scalar_select 0, %s4, %s2
  $region1: #{tpu_custom_call.1} parent=0
    #allocation2 [shape = 'u8[57344]{0}', space=vmem, size = 0xe000, scoped, tag = 'input window, operand 0, single buffered']
    #allocation3 [shape = 's32[1]{0}', space=sflag, size = 0x4, scoped, tag = 'scoped memory for tpu_custom_call.1']
    #allocation4 [shape = 's32[1]{0}', space=sflag, size = 0x4, scoped, tag = 'scoped memory for tpu_custom_call.1']
    #allocation5 [shape = 'u8[1024]{0}', space=vmem, size = 0x400, scoped, tag = 'output window, operand 0, single buffered']
    %6 = vsyncpa [#allocation3], 0
    %7 = vsyncpa [#allocation4], 0
    // Predicated region
    $region2: #{tpu_custom_call.1} parent=1 // pred_check
      _
    $region3: #{tpu_custom_call.1} parent=1 // pred_check_branch
      %9 = sbr.rel (0) target = $region5
    $region4: #{tpu_custom_call.1} parent=1 // pred_region
      %11 = vsyncadd [#allocation3], 0
      %s12 = sshll.u32 %s0, 4
      %s13 = int_to_ptr.hbm [resolvable:$true] %s12
      %s14 = sshll.u32 [#allocation2], 4
      %s15 = int_to_ptr.vmem [resolvable:$true] %s14
      %20 = dma.hbm_to_vmem [thread:$0]  %s13, 1792, %s15, [#allocation3], 896, 896, 56
    $region5: #{tpu_custom_call.1} parent=1 // pred_fallthru
      _
    // Predicated region
    $region6: #{tpu_custom_call.1} parent=1 // pred_check
      _
    $region7: #{tpu_custom_call.1} parent=1 // pred_check_branch
      %22 = sbr.rel (0) target = $region9
    $region8: #{tpu_custom_call.1} parent=1 // pred_region
      %24 = dma.done [#allocation3], 1792
    $region9: #{tpu_custom_call.1} parent=1 // pred_fallthru
      _
    %v25 = vld [vmem:[#allocation2] sm:$0xff]
    %v26 = vld [vmem:[#allocation2 + $0x8] sm:$0xff]
    %v27 = vld [vmem:[#allocation2 + $0x10] sm:$0xff]
    %v28 = vld [vmem:[#allocation2 + $0x18] sm:$0xff]
    %v29 = vld [vmem:[#allocation2 + $0x20] sm:$0xff]
    %v30 = vld [vmem:[#allocation2 + $0x28] sm:$0xff]
    %v31 = vld [vmem:[#allocation2 + $0x30] sm:$0xff]
    %v32 = vld [vmem:[#allocation2 + $0x38] sm:$0xff]
    %v33 = vld [vmem:[#allocation2 + $0x40] sm:$0xff]
    %v34 = vld [vmem:[#allocation2 + $0x48] sm:$0xff]
    %v35 = vld [vmem:[#allocation2 + $0x50] sm:$0xff]
    %v36 = vld [vmem:[#allocation2 + $0x58] sm:$0xff]
    %v37 = vld [vmem:[#allocation2 + $0x60] sm:$0xff]
    %v38 = vld [vmem:[#allocation2 + $0x68] sm:$0xff]
    %v39 = vmax.f32 %v25, 1e-06
    %v40 = vmax.f32 %v26, 1e-06
    %v41 = vmax.f32 %v27, 1e-06
    %v42 = vmax.f32 %v28, 1e-06
    %v43 = vmax.f32 %v29, 1e-06
    %v44 = vmax.f32 %v30, 1e-06
    %v45 = vmax.f32 %v31, 1e-06
    %v46 = vmax.f32 %v32, 1e-06
    %v47 = vmax.f32 %v33, 1e-06
    %v48 = vmax.f32 %v34, 1e-06
    %v49 = vmax.f32 %v35, 1e-06
    %v50 = vmax.f32 %v36, 1e-06
    %v51 = vmax.f32 %v37, 1e-06
    %v52 = vmax.f32 %v38, 1e-06
    %v53 = vmul.f32 %v39, %v39
    %v54 = vmul.f32 %v40, %v40
    %v55 = vmul.f32 %v41, %v41
    %v56 = vmul.f32 %v42, %v42
    %v57 = vmul.f32 %v43, %v43
    %v58 = vmul.f32 %v44, %v44
    %v59 = vmul.f32 %v45, %v45
    %v60 = vmul.f32 %v46, %v46
    %v61 = vmul.f32 %v47, %v47
    %v62 = vmul.f32 %v48, %v48
    %v63 = vmul.f32 %v49, %v49
    %v64 = vmul.f32 %v50, %v50
    %v65 = vmul.f32 %v51, %v51
    %v66 = vmul.f32 %v52, %v52
    %v67 = vmul.f32 %v53, %v39
    %v68 = vmul.f32 %v54, %v40
    %v69 = vmul.f32 %v55, %v41
    %v70 = vmul.f32 %v56, %v42
    %v71 = vmul.f32 %v57, %v43
    %v72 = vmul.f32 %v58, %v44
    %v73 = vmul.f32 %v59, %v45
    %v74 = vmul.f32 %v60, %v46
    %v75 = vmul.f32 %v61, %v47
    %v76 = vmul.f32 %v62, %v48
    %v77 = vmul.f32 %v63, %v49
    %v78 = vmul.f32 %v64, %v50
    %v79 = vmul.f32 %v65, %v51
    %v80 = vmul.f32 %v66, %v52
    %v81 = vadd.f32 %v67, %v68
    %v82 = vadd.f32 %v81, %v69
    %v83 = vadd.f32 %v82, %v70
    %v84 = vadd.f32 %v83, %v71
    %v85 = vadd.f32 %v84, %v72
    %vm86 = vcmask 130048
    %v87 = vsel %vm86, %v73, 0.0
    %v88 = vadd.f32 %v85, %v87
    %89 = vadd.xlane.f32.xlu0 %v88
    %v90 = vpop.xlane.xlu0 %89
    %v91 = vadd.f32 %v74, %v75
    %v92 = vadd.f32 %v91, %v76
    %v93 = vadd.f32 %v92, %v77
    %v94 = vadd.f32 %v93, %v78
    %v95 = vadd.f32 %v94, %v79
    %v96 = vsel %vm86, %v80, 0.0
    %v97 = vadd.f32 %v95, %v96
    %98 = vadd.xlane.f32.xlu0 %v97
    %v99 = vpop.xlane.xlu0 %98
    %v100 = vrcp.pop 784.0
    %v101 = vmul.f32 784.0, %v100
    %v102 = vsub.f32 1.0, %v101
    %v103 = vmul.f32 %v100, %v102
    %v104 = vadd.f32 %v100, %v103
    %vm105 = vweird.f32 %v100
    %v106 = vsel %vm105, %v100, %v104
    %v107 = vmul.f32 %v90, %v106
    %v108 = vmul.f32 %v99, %v106
    %v109 = vlog2.pop %v107
    %v110 = vmul.f32 %v109, 0.6931472
    %v111 = vlog2.pop %v108
    %v112 = vmul.f32 %v111, 0.6931472
    %v113 = vmul.f32 %v110, 0.33333334
    %v114 = vmul.f32 %v112, 0.33333334
    %v115 = vmul.f32 %v113, 1.442695
    %v116 = vpow.pop %v115
    %v117 = vmul.f32 %v114, 1.442695
    %v118 = vpow.pop %v117
    %v121 = vlaneseq
    %v122 = vand.u32 %v121, 127
    %v123 = vperm.slane %v116, %v122
    %v124 = vperm.slane %v118, %v122
    %vm125 = vcmask 1041409
    %v126 = vsel %vm125, %v124, %v123
    %vm128 = vcmask 58368
    %129 = vst.msk [vmem:[#allocation5] sm:$0x3] %vm128, %v126
    // Predicated region
    $region10: #{tpu_custom_call.1} parent=1 // pred_check
      _
    $region11: #{tpu_custom_call.1} parent=1 // pred_check_branch
      %131 = sbr.rel (0) target = $region13
    $region12: #{tpu_custom_call.1} parent=1 // pred_region
      %133 = vsyncadd [#allocation4], 0
      %s135 = sshll.u32 [#allocation5], 4
      %s136 = int_to_ptr.vmem [resolvable:$true] %s135
      %s137 = sshll.u32 %s1, 4
      %s138 = int_to_ptr.hbm [resolvable:$true] %s137
      %140 = dma.vmem_to_hbm [thread:$0]  %s136, 32, %s138, [#allocation4]
    $region13: #{tpu_custom_call.1} parent=1 // pred_fallthru
      _
    // Predicated region
    $region14: #{tpu_custom_call.1} parent=1 // pred_check
      _
    $region15: #{tpu_custom_call.1} parent=1 // pred_check_branch
      %142 = sbr.rel (0) target = $region17
    $region16: #{tpu_custom_call.1} parent=1 // pred_region
      %144 = dma.done [#allocation4], 32
    $region17: #{tpu_custom_call.1} parent=1 // pred_fallthru
      _
    %145 = vsyncpa [#allocation3], 1
    %146 = vsyncpa [#allocation4], 1

</llo_original>
